<compile_context>
chip_gen: v6e
topology: v6e:2x2x1
jax: 0.10.0
libtpu: 0.0.40
codegen_flags: <defaults>
</compile_context>

<pallas_src>
import math
from functools import partial

import numpy as np
import jax
import jax.numpy as jnp
from jax.experimental import pallas as pl
from jax.experimental.pallas import tpu as pltpu


# ----------------------------------------------------------------------------
# Deterministic wavelet filter banks (replaces pywt.Wavelet(wavename)).
# Coefficients are pywt's *reconstruction* filters (rec_lo / rec_hi), which is
# what DWT_1D reads from pywt.Wavelet(...).
# ----------------------------------------------------------------------------
_SQRT2 = math.sqrt(2.0)
_WAVELETS = {
    # wavename: (rec_lo, rec_hi)
    "haar": (
        [1.0 / _SQRT2, 1.0 / _SQRT2],
        [1.0 / _SQRT2, -1.0 / _SQRT2],
    ),
    "db2": (
        [0.48296291314469025, 0.836516303737469,
         0.22414386804185735, -0.12940952255092145],
        [-0.12940952255092145, -0.22414386804185735,
         0.836516303737469, -0.48296291314469025],
    ),
}


def build_dwt_matrices(wavename: str, input_length: int):
    """Exact port of DWT_1D.get_matrix() (numpy, returned as float32)."""
    band_low, band_high = _WAVELETS[wavename]
    assert len(band_low) == len(band_high)
    band_length = len(band_low)
    assert band_length % 2 == 0
    band_length_half = band_length // 2

    L1 = input_length
    L = L1 // 2
    matrix_h = np.zeros((L, L1 + band_length - 2), dtype=np.float64)
    matrix_g = np.zeros((L1 - L, L1 + band_length - 2), dtype=np.float64)
    end = None if band_length_half == 1 else -band_length_half + 1

    index = 0
    for i in range(L):
        for j in range(band_length):
            matrix_h[i, index + j] = band_low[j]
        index += 2
    index = 0
    for i in range(L1 - L):
        for j in range(band_length):
            matrix_g[i, index + j] = band_high[j]
        index += 2

    matrix_h = matrix_h[:, band_length_half - 1:end]
    matrix_g = matrix_g[:, band_length_half - 1:end]
    return (jnp.asarray(matrix_h, dtype=jnp.float32),
            jnp.asarray(matrix_g, dtype=jnp.float32))


def build_dwt_weight(wavename: str, input_length: int, dtype=jnp.float32):
    """Concatenated, pre-transposed projection weight W = [L.T | H.T].

    Shape (L1, L_lo + L_hi) == (L1, L1).  Build ONCE per input length in the
    compute dtype and reuse across calls (no per-call cast / transpose).
    NOTE: casting to bf16 here degrades filter precision vs the f32 PyTorch
    reference (accumulation stays f32).
    """
    matrix_low, matrix_high = build_dwt_matrices(wavename, input_length)
    w = jnp.concatenate([matrix_low.T, matrix_high.T], axis=1).astype(dtype)
    return w, matrix_low.shape[0], matrix_high.shape[0]


# ----------------------------------------------------------------------------
# Pallas kernel: fused low/high projection, one lane-dense matmul per row tile,
# both output halves stored directly from VMEM.
# ----------------------------------------------------------------------------
def _dwt1d_kernel(x_ref, w_ref, lo_ref, hi_ref, *, l_lo: int):
    res = jnp.dot(x_ref[...], w_ref[...], preferred_element_type=jnp.float32)
    lo_ref[...] = res[:, :l_lo].astype(lo_ref.dtype)
    hi_ref[...] = res[:, l_lo:].astype(hi_ref.dtype)


def _cdiv(a: int, b: int) -> int:
    return -(-a // b)


def _round_up(a: int, b: int) -> int:
    return ((a + b - 1) // b) * b


def _vmem_capacity_bytes() -> int:
    """Per-core VMEM capacity; conservative 64 MiB (v7x) if query fails."""
    try:
        cap = getattr(pltpu.get_tpu_info(), "vmem_capacity_bytes", None)
        if cap:
            return int(cap)
    except Exception:
        pass
    return 64 * 1024 * 1024


def _pick_tile_rows(rows: int, l1: int, n_out: int, itemsize: int,
                    tile_budget_bytes: int) -> int:
    """Row-tile size: multiple of 8, sized against the VMEM budget left after
    the resident weight, and capped so the rows grid has >= 8 steps when the
    problem is big enough (megacore + pipeline depth)."""
    # Double-buffered per-row bytes: x tile (l1) + lfc/hfc out tiles (n_out).
    per_row = 2 * (l1 + n_out) * itemsize
    max_tm_vmem = max(8, (tile_budget_bytes // max(per_row, 1)) // 8 * 8)
    tm_grid = max(8, _round_up(_cdiv(rows, 8), 8))      # aim for >= 8 steps
    tm = min(1024, max_tm_vmem, tm_grid, _round_up(rows, 8))
    return max(8, (tm // 8) * 8)


def dwt_1d(x, weight, l_lo: int, l_hi: int, *, force_pallas: bool = False):
    """x: (N, C, L1), weight: (L1, l_lo + l_hi) = [L.T | H.T].

    Returns (lfc (N, C, l_lo), hfc (N, C, l_hi))."""
    N, C, L1 = x.shape
    n_out = l_lo + l_hi
    assert weight.shape == (L1, n_out)
    rows = N * C

    w = weight if weight.dtype == x.dtype else weight.astype(x.dtype)
    x2d = x.reshape(rows, L1)

    itemsize = jnp.dtype(x.dtype).itemsize
    vmem_cap = _vmem_capacity_bytes()
    vmem_limit = min(int(0.9 * vmem_cap), 128 * 1024 * 1024)
    # Resident weight: budget 2 copies in case the constant-index block is
    # still double-buffered by the pipeline, plus 2 MiB slack for Mosaic.
    weight_bytes = 2 * L1 * n_out * itemsize
    tile_budget = vmem_limit - weight_bytes - (2 << 20)
    min_tile_bytes = 8 * 2 * (L1 + n_out) * itemsize

    tiny = rows * L1 * itemsize < (64 << 10)
    weight_too_big = tile_budget < min_tile_bytes
    if not force_pallas and (tiny or weight_too_big):
        # Tiny problem (pallas dispatch dominates) or the resident weight
        # does not fit in VMEM: let XLA do the matmul (it tiles K/N itself).
        # TODO(synk): polyphase roll+FMA kernel removes the huge-L1 case.
        out2d = jnp.dot(x2d, w)
        return (out2d[:, :l_lo].reshape(N, C, l_lo),
                out2d[:, l_lo:].reshape(N, C, l_hi))

    tm = _pick_tile_rows(rows, L1, n_out, itemsize,
                         max(tile_budget, min_tile_bytes))
    grid = (_cdiv(rows, tm),)

    lfc2d, hfc2d = pl.pallas_call(
        partial(_dwt1d_kernel, l_lo=l_lo),
        out_shape=(
            jax.ShapeDtypeStruct((rows, l_lo), x.dtype),
            jax.ShapeDtypeStruct((rows, l_hi), x.dtype),
        ),
        grid=grid,
        in_specs=[
            pl.BlockSpec((tm, L1), lambda i: (i, 0)),       # row tiles
            pl.BlockSpec((L1, n_out), lambda i: (0, 0)),    # resident weight
        ],
        out_specs=[
            pl.BlockSpec((tm, l_lo), lambda i: (i, 0)),
            pl.BlockSpec((tm, l_hi), lambda i: (i, 0)),
        ],
        compiler_params=pltpu.CompilerParams(
            dimension_semantics=("parallel",),
            vmem_limit_bytes=vmem_limit,
        ),
    )(x2d, w)

    return lfc2d.reshape(N, C, l_lo), hfc2d.reshape(N, C, l_hi)


if __name__ == "__main__":
    key = jax.random.PRNGKey(0)
    k1, k2 = jax.random.split(key)

    # Test 1: small canonical shape (N, C, Length), haar.
    N, C, LENGTH = 2, 4, 16
    x = jax.random.normal(k1, (N, C, LENGTH), dtype=jnp.float32)
    weight, L_LO, L_HI = build_dwt_weight("haar", LENGTH)
    lfc, hfc = dwt_1d(x, weight, L_LO, L_HI, force_pallas=True)
    jax.block_until_ready((lfc, hfc))

    matrix_low, matrix_high = build_dwt_matrices("haar", LENGTH)
    assert lfc.shape == (N, C, LENGTH // 2)
    assert hfc.shape == (N, C, LENGTH - LENGTH // 2)
    np.testing.assert_allclose(np.asarray(lfc),
                               np.asarray(jnp.matmul(x, matrix_low.T)),
                               rtol=1e-5, atol=1e-5)
    np.testing.assert_allclose(np.asarray(hfc),
                               np.asarray(jnp.matmul(x, matrix_high.T)),
                               rtol=1e-5, atol=1e-5)

    # Test 2: rows not a multiple of the row tile (ragged last grid step), db2.
    N2, C2, LEN2 = 2, 13, 16
    x2 = jax.random.normal(k2, (N2, C2, LEN2), dtype=jnp.float32)
    w2, lo2, hi2 = build_dwt_weight("db2", LEN2)
    lfc2, hfc2 = dwt_1d(x2, w2, lo2, hi2, force_pallas=True)
    jax.block_until_ready((lfc2, hfc2))

    ml2, mh2 = build_dwt_matrices("db2", LEN2)
    np.testing.assert_allclose(np.asarray(lfc2),
                               np.asarray(jnp.matmul(x2, ml2.T)),
                               rtol=1e-5, atol=1e-5)
    np.testing.assert_allclose(np.asarray(hfc2),
                               np.asarray(jnp.matmul(x2, mh2.T)),
                               rtol=1e-5, atol=1e-5)

    print("KERNEL_OK")
</pallas_src>

<mosaic_0001>
module attributes {stable_mosaic.version = 11 : i64} {
  func.func @_dwt1d_kernel(%arg0: i32, %arg1: memref<8x16xf32, #tpu.memory_space<vmem>>, %arg2: memref<16x16xf32, #tpu.memory_space<vmem>>, %arg3: memref<8x8xf32, #tpu.memory_space<vmem>>, %arg4: memref<8x8xf32, #tpu.memory_space<vmem>>) attributes {dimension_semantics = [#tpu.dimension_semantics<parallel>], iteration_bounds = array<i64: 1>, scalar_prefetch = 0 : i64, scratch_operands = 0 : i64, tpu.core_type = #tpu.core_type<tc>, window_params = [{transform_indices = @transform_0, window_bounds = array<i64: 8, 16>}, {pipeline_mode = #tpu.pipeline_mode<synchronous>, transform_indices = @transform_1, window_bounds = array<i64: 16, 16>}, {transform_indices = @transform_2, window_bounds = array<i64: 8, 8>}, {transform_indices = @transform_3, window_bounds = array<i64: 8, 8>}]} {
    %c0 = arith.constant 0 : index
    %c0_0 = arith.constant 0 : index
    %0 = vector.load %arg1[%c0, %c0_0] : memref<8x16xf32, #tpu.memory_space<vmem>>, vector<8x16xf32>
    %c0_1 = arith.constant 0 : index
    %c0_2 = arith.constant 0 : index
    %1 = vector.load %arg2[%c0_1, %c0_2] : memref<16x16xf32, #tpu.memory_space<vmem>>, vector<16x16xf32>
    %cst = arith.constant dense<0.000000e+00> : vector<8x16xf32>
    %2 = tpu.matmul %0, %1, %cst {dimension_numbers = #tpu.dot_dimension_numbers<[1], [0], [0], [1], [0, 0, 1, 1], [], []>} : vector<8x16xf32>, vector<16x16xf32>, vector<8x16xf32> -> vector<8x16xf32>
    %3 = vector.extract_strided_slice %2 {offsets = [0, 0], sizes = [8, 8], strides = [1, 1]} : vector<8x16xf32> to vector<8x8xf32>
    %c0_3 = arith.constant 0 : index
    %c0_4 = arith.constant 0 : index
    %4 = vector.load %arg3[%c0_3, %c0_4] : memref<8x8xf32, #tpu.memory_space<vmem>>, vector<8x8xf32>
    tpu.vector_store %arg3[%c0_3, %c0_4], %3 {strides = array<i32>} : memref<8x8xf32, #tpu.memory_space<vmem>>, vector<8x8xf32>,
    %5 = vector.extract_strided_slice %2 {offsets = [0, 8], sizes = [8, 8], strides = [1, 1]} : vector<8x16xf32> to vector<8x8xf32>
    %c0_5 = arith.constant 0 : index
    %c0_6 = arith.constant 0 : index
    %6 = vector.load %arg4[%c0_5, %c0_6] : memref<8x8xf32, #tpu.memory_space<vmem>>, vector<8x8xf32>
    tpu.vector_store %arg4[%c0_5, %c0_6], %5 {strides = array<i32>} : memref<8x8xf32, #tpu.memory_space<vmem>>, vector<8x8xf32>,
    return
  }
  func.func @transform_0(%arg0: i32) -> (i32, i32) {
    %c0_i32 = arith.constant 0 : i32
    %c0_i32_0 = arith.constant 0 : i32
    return %arg0, %c0_i32 : i32, i32
  }
  func.func @transform_1(%arg0: i32) -> (i32, i32) {
    %c0_i32 = arith.constant 0 : i32
    %c0_i32_0 = arith.constant 0 : i32
    %c0_i32_1 = arith.constant 0 : i32
    return %c0_i32, %c0_i32_0 : i32, i32
  }
  func.func @transform_2(%arg0: i32) -> (i32, i32) {
    %c0_i32 = arith.constant 0 : i32
    %c0_i32_0 = arith.constant 0 : i32
    return %arg0, %c0_i32 : i32, i32
  }
  func.func @transform_3(%arg0: i32) -> (i32, i32) {
    %c0_i32 = arith.constant 0 : i32
    %c0_i32_0 = arith.constant 0 : i32
    return %arg0, %c0_i32 : i32, i32
  }
}

</mosaic_0001>

<llo_original>
// kernel: tpu_custom_call.1
$region0: #{tpu_custom_call.1}
  #allocation0 [shape = 'u32[]', space=smem, size = 0x4, offset = 0x4, fixed_abs, tag = 'smem constant byte address 0x4 - core index']
  #allocation1 [shape = 'u32[144,128]{1,0:T(1,128)}', space=vmem, size = 0x12000, scoped, tag = 'internal scratch']
  %s0 = inlined_call_operand.hbm [shape: f32[8,16], index: 0, kind: input, shape index: {}]
  %s1 = inlined_call_operand.hbm [shape: f32[16,16], index: 1, kind: input, shape index: {}]
  %s2 = inlined_call_operand.hbm [shape: f32[8,8], index: 2, kind: output, shape index: {0}]
  %s3 = inlined_call_operand.hbm [shape: f32[8,8], index: 3, kind: output, shape index: {1}]
  %4 = xla_tuple %s2, %s3
  %s5 = sld [smem:[#allocation0]]
  $region34: #{tpu_custom_call.1} parent=0
    _
  %s7 = ssub.s32 1, %s5
  %s8 = scalar_select 0, %s7, %s5
  $region1: #{tpu_custom_call.1} parent=0
    #allocation2 [shape = 'u8[4096]{0}', space=vmem, size = 0x1000, scoped, tag = 'input window, operand 0, single buffered']
    #allocation3 [shape = 's32[1]{0}', space=sflag, size = 0x4, scoped, tag = 'scoped memory for tpu_custom_call.1']
    #allocation4 [shape = 's32[1]{0}', space=sflag, size = 0x4, scoped, tag = 'scoped memory for tpu_custom_call.1']
    #allocation5 [shape = 'u8[8192]{0}', space=vmem, size = 0x2000, scoped, tag = 'input window, operand 1, single buffered']
    #allocation6 [shape = 's32[1]{0}', space=sflag, size = 0x4, scoped, tag = 'scoped memory for tpu_custom_call.1']
    #allocation7 [shape = 'u8[4096]{0}', space=vmem, size = 0x1000, scoped, tag = 'output window, operand 0, single buffered']
    #allocation8 [shape = 'u8[4096]{0}', space=vmem, size = 0x1000, scoped, tag = 'output window, operand 1, single buffered']
    #allocation9 [shape = 's32[1]{0}', space=sflag, size = 0x4, scoped, tag = 'scoped memory for tpu_custom_call.1']
    %9 = vsyncpa [#allocation3], 0
    %10 = vsyncpa [#allocation6], 0
    %11 = vsyncpa [#allocation4], 0
    %12 = vsyncpa [#allocation9], 0
    // Predicated region
    $region2: #{tpu_custom_call.1} parent=1 // pred_check
      _
    $region3: #{tpu_custom_call.1} parent=1 // pred_check_branch
      %14 = sbr.rel (0) target = $region5
    $region4: #{tpu_custom_call.1} parent=1 // pred_region
      %s16 = ssub.s32 128, 128
      %17 = vsyncadd [#allocation3], %s16
      %s19 = sshll.u32 [#allocation2], 4
      %s20 = int_to_ptr.vmem [resolvable:$true] %s19
      %22 = dma.hbm_to_vmem [thread:$0]  %s0, 128, %s20, [#allocation3]
    $region5: #{tpu_custom_call.1} parent=1 // pred_fallthru
      _
    // Predicated region
    $region6: #{tpu_custom_call.1} parent=1 // pred_check
      _
    $region7: #{tpu_custom_call.1} parent=1 // pred_check_branch
      %24 = sbr.rel (0) target = $region9
    $region8: #{tpu_custom_call.1} parent=1 // pred_region
      %s26 = ssub.s32 256, 256
      %27 = vsyncadd [#allocation6], %s26
      %s28 = sshll.u32 [#allocation5], 4
      %s29 = int_to_ptr.vmem [resolvable:$true] %s28
      %34 = dma.hbm_to_vmem [thread:$0]  %s1, 256, %s29, [#allocation6], 128, 128, 8
    $region9: #{tpu_custom_call.1} parent=1 // pred_fallthru
      _
    // Predicated region
    $region10: #{tpu_custom_call.1} parent=1 // pred_check
      _
    $region11: #{tpu_custom_call.1} parent=1 // pred_check_branch
      %36 = sbr.rel (0) target = $region13
    $region12: #{tpu_custom_call.1} parent=1 // pred_region
      %37 = dma.done [#allocation3], 128
    $region13: #{tpu_custom_call.1} parent=1 // pred_fallthru
      _
    // Predicated region
    $region14: #{tpu_custom_call.1} parent=1 // pred_check
      _
    $region15: #{tpu_custom_call.1} parent=1 // pred_check_branch
      %39 = sbr.rel (0) target = $region17
    $region16: #{tpu_custom_call.1} parent=1 // pred_region
      %40 = dma.done [#allocation6], 256
    $region17: #{tpu_custom_call.1} parent=1 // pred_fallthru
      _
    %v41 = vld [vmem:[#allocation2] sm:$0xff]
    %v42 = vld [vmem:[#allocation5] sm:$0xff]
    %v43 = vld [vmem:[#allocation5 + $0x8] sm:$0xff]
    %vm44 = vcmask 130048
    %v46 = vsel %vm44, %v41, 0
    %48 = vmatprep.subr.mxu0 0.0
    %49 = vmatpush1.msra.mxu0 0.0
    %50 = vmatprep.subr.mxu0 0.0
    %51 = vmatpush1.msra.mxu0 0.0
    %52 = vmatprep.subr.mxu0 0.0
    %53 = vmatpush1.msra.mxu0 0.0
    %54 = vmatprep.subr.mxu0 0.0
    %55 = vmatpush1.msra.mxu0 0.0
    %56 = vmatprep.subr.mxu0 0.0
    %57 = vmatpush1.msra.mxu0 0.0
    %58 = vmatprep.subr.mxu0 0.0
    %59 = vmatpush1.msra.mxu0 0.0
    %60 = vmatprep.subr.mxu0 0.0
    %61 = vmatpush1.msra.mxu0 0.0
    %62 = vmatprep.subr.mxu0 0.0
    %63 = vmatpush1.msra.mxu0 0.0
    %64 = vmatprep.subr.mxu0 0.0
    %65 = vmatpush1.msra.mxu0 0.0
    %66 = vmatprep.subr.mxu0 0.0
    %67 = vmatpush1.msra.mxu0 0.0
    %68 = vmatprep.subr.mxu0 0.0
    %69 = vmatpush1.msra.mxu0 0.0
    %70 = vmatprep.subr.mxu0 0.0
    %71 = vmatpush1.msra.mxu0 0.0
    %72 = vmatprep.subr.mxu0 0.0
    %73 = vmatpush1.msra.mxu0 0.0
    %74 = vmatprep.subr.mxu0 0.0
    %75 = vmatpush1.msra.mxu0 0.0
    %76 = vmatprep.subr.mxu0 0.0
    %77 = vmatpush1.msra.mxu0 %v43
    %78 = vmatprep.subr.mxu0 0.0
    %79 = vmatpush1.msra.mxu0 %v42
    %80 = vmatprep.subr.mxu0 0.0
    %81 = vmatpush2.msra.mxu0 0.0
    %82 = vmatprep.subr.mxu0 0.0
    %83 = vmatpush2.msra.mxu0 0.0
    %84 = vmatprep.subr.mxu0 0.0
    %85 = vmatpush2.msra.mxu0 0.0
    %86 = vmatprep.subr.mxu0 0.0
    %87 = vmatpush2.msra.mxu0 0.0
    %88 = vmatprep.subr.mxu0 0.0
    %89 = vmatpush2.msra.mxu0 0.0
    %90 = vmatprep.subr.mxu0 0.0
    %91 = vmatpush2.msra.mxu0 0.0
    %92 = vmatprep.subr.mxu0 0.0
    %93 = vmatpush2.msra.mxu0 0.0
    %94 = vmatprep.subr.mxu0 0.0
    %95 = vmatpush2.msra.mxu0 0.0
    %96 = vmatprep.subr.mxu0 0.0
    %97 = vmatpush2.msra.mxu0 0.0
    %98 = vmatprep.subr.mxu0 0.0
    %99 = vmatpush2.msra.mxu0 0.0
    %100 = vmatprep.subr.mxu0 0.0
    %101 = vmatpush2.msra.mxu0 0.0
    %102 = vmatprep.subr.mxu0 0.0
    %103 = vmatpush2.msra.mxu0 0.0
    %104 = vmatprep.subr.mxu0 0.0
    %105 = vmatpush2.msra.mxu0 0.0
    %106 = vmatprep.subr.mxu0 0.0
    %107 = vmatpush2.msra.mxu0 0.0
    %108 = vmatprep.subr.mxu0 0.0
    %109 = vmatpush2.msra.mxu0 0.0
    %110 = vmatprep.subr.mxu0 0.0
    %111 = vmatpush2.msra.mxu0 0.0
    %112 = vmatprep.mubr.f32.mxu0 0.0
    %113 = vmatmul.mubr.f32.gmra.mxu0 %v46
    %v114 = vpop.f32.mrf.mxu0
    %v115 = vadd.f32 0.0, %v114
    %v116 = vpop.f32.mrf.mxu0
    %117 = vdwg.mxu0
    %vm118 = vcmask 64512
    %119 = vst.msk [vmem:[#allocation7] sm:$0xff] %vm118, %v115
    %121 = vrot.lane.b32.xlu0 %v115, 120
    %v122 = vpop.permute.xlu0 %121
    %124 = vst.msk [vmem:[#allocation8] sm:$0xff] %vm118, %v122
    // Predicated region
    $region18: #{tpu_custom_call.1} parent=1 // pred_check
      _
    $region19: #{tpu_custom_call.1} parent=1 // pred_check_branch
      %126 = sbr.rel (0) target = $region21
    $region20: #{tpu_custom_call.1} parent=1 // pred_region
      %s128 = ssub.s32 128, 128
      %129 = vsyncadd [#allocation4], %s128
      %s131 = sshll.u32 [#allocation7], 4
      %s132 = int_to_ptr.vmem [resolvable:$true] %s131
      %134 = dma.vmem_to_hbm [thread:$0]  %s132, 128, %s2, [#allocation4]
    $region21: #{tpu_custom_call.1} parent=1 // pred_fallthru
      _
    // Predicated region
    $region22: #{tpu_custom_call.1} parent=1 // pred_check
      _
    $region23: #{tpu_custom_call.1} parent=1 // pred_check_branch
      %136 = sbr.rel (0) target = $region25
    $region24: #{tpu_custom_call.1} parent=1 // pred_region
      %s138 = ssub.s32 128, 128
      %139 = vsyncadd [#allocation9], %s138
      %s141 = sshll.u32 [#allocation8], 4
      %s142 = int_to_ptr.vmem [resolvable:$true] %s141
      %144 = dma.vmem_to_hbm [thread:$0]  %s142, 128, %s3, [#allocation9]
    $region25: #{tpu_custom_call.1} parent=1 // pred_fallthru
      _
    // Predicated region
    $region26: #{tpu_custom_call.1} parent=1 // pred_check
      _
    $region27: #{tpu_custom_call.1} parent=1 // pred_check_branch
      %146 = sbr.rel (0) target = $region29
    $region28: #{tpu_custom_call.1} parent=1 // pred_region
      %147 = dma.done [#allocation4], 128
    $region29: #{tpu_custom_call.1} parent=1 // pred_fallthru
      _
    // Predicated region
    $region30: #{tpu_custom_call.1} parent=1 // pred_check
      _
    $region31: #{tpu_custom_call.1} parent=1 // pred_check_branch
      %149 = sbr.rel (0) target = $region33
    $region32: #{tpu_custom_call.1} parent=1 // pred_region
      %150 = dma.done [#allocation9], 128
    $region33: #{tpu_custom_call.1} parent=1 // pred_fallthru
      _
    %151 = vsyncpa [#allocation3], 1
    %152 = vsyncpa [#allocation6], 1
    %153 = vsyncpa [#allocation4], 1
    %154 = vsyncpa [#allocation9], 1

</llo_original>
